<compile_context>
chip_gen: v6e
topology: v6e:2x2x1
jax: 0.10.0
libtpu: 0.0.40
codegen_flags: <defaults>
</compile_context>

<pallas_src>
import jax
import jax.numpy as jnp
from jax.experimental import pallas as pl
from jax.experimental.pallas import tpu as pltpu


# ---------------------------------------------------------------------------
# Device / VMEM budget helpers (generation aware: v5e/v6e 128 MiB, v7x 64 MiB)
# ---------------------------------------------------------------------------
_DEFAULT_VMEM_CAPACITY = 64 * 1024 * 1024  # conservative fallback (v7x per-TC)


def _tpu_vmem_capacity_bytes():
    try:
        info = pltpu.get_tpu_info()
        cap = getattr(info, "vmem_capacity_bytes", None)
        if cap:
            return int(cap)
    except Exception:
        pass
    return _DEFAULT_VMEM_CAPACITY


def _vmem_limit_bytes():
    # Half of physical VMEM: 64 MiB on v5e/v6e, 32 MiB on v7x. Leaves headroom
    # for Mosaic internal scratch and compute temporaries.
    return max(32 * 1024 * 1024, _tpu_vmem_capacity_bytes() // 2)


def _pick_hidden_tile(input_size, hidden_size, weight_bytes):
    """Largest lane-aligned hidden tile whose double-buffered weight slabs fit
    under a generation-aware share of the scoped-VMEM limit."""
    if hidden_size % 128 != 0:
        return hidden_size  # small / unaligned H: single full-array block
    budget = _vmem_limit_bytes() // 3  # bytes for 2x(Wx_tile + Wh_tile)
    rows = input_size + hidden_size
    for cand in (1024, 512, 256, 128):
        if hidden_size % cand == 0 and 2 * rows * 3 * cand * weight_bytes <= budget:
            return cand
    # TODO(synk): for very large D+H even a 128-wide hidden tile exceeds the
    # budget; the proper fix is a second "arbitrary" grid axis over the
    # contraction rows with an f32 accumulator scratch, not implemented here.
    return 128


# ---------------------------------------------------------------------------
# Kernel
# ---------------------------------------------------------------------------
def _gru_kernel(x_ref, hmat_ref, hprev_ref, wx_ref, wh_ref, b_ref, out_ref):
    """One hidden tile of the GRU cell update.

    x_ref    : (B, D)        resident input, weight dtype
    hmat_ref : (B, H)        resident previous hidden state, weight dtype
    hprev_ref: (B, TN)       f32 tile of previous hidden state (for the blend)
    wx_ref   : (1, D, 3*TN)  tile-major slab [W_xr_j | W_xu_j | W_xc_j]
    wh_ref   : (1, H, 3*TN)  tile-major slab [W_hr_j | W_hu_j | W_hc_j]
    b_ref    : (1, 1, 3*TN)  tile-major interleaved-bias slab (f32)
    out_ref  : (B, TN)       new hidden state tile (f32)
    """
    tn = out_ref.shape[-1]

    # Two fused MXU pushes per hidden tile, N = 3*TN, f32 accumulation.
    xz = jnp.dot(x_ref[...], wx_ref[0],
                 preferred_element_type=jnp.float32) + b_ref[0]
    hz = jnp.dot(hmat_ref[...], wh_ref[0],
                 preferred_element_type=jnp.float32)

    xb_r, xb_u, xb_c = xz[:, :tn], xz[:, tn:2 * tn], xz[:, 2 * tn:]
    h_r,  h_u,  h_c  = hz[:, :tn], hz[:, tn:2 * tn], hz[:, 2 * tn:]

    r = jax.nn.sigmoid(xb_r + h_r)
    u = jax.nn.sigmoid(xb_u + h_u)
    c = jnp.tanh(xb_c + r * h_c)

    out_ref[...] = (1.0 - u) * hprev_ref[...] + u * c


# ---------------------------------------------------------------------------
# Parameter packing (done once, not per forward call)
# ---------------------------------------------------------------------------
def pack_gru_params(params, weight_dtype=jnp.float32, hidden_tile=None):
    """Fuse, tile-major permute and (optionally) downcast the raw parameters.

    Columns of the fused (rows, 3H) weights (gate-block order [r | u | c]) are
    regrouped into per-tile slabs [r_j | u_j | c_j] stored tile-major as a 3-D
    array (nt, rows, 3*tn), so each grid step streams one contiguous HBM slab.
    The interleaved bias row gets the identical column permutation.
    """
    D = params["W_xr"].shape[0]
    H = params["W_hr"].shape[0]
    wbytes = jnp.dtype(weight_dtype).itemsize
    if hidden_tile is None:
        hidden_tile = _pick_hidden_tile(D, H, wbytes)
    assert H % hidden_tile == 0, "hidden_tile must divide hidden_size"
    nt = H // hidden_tile
    tn = hidden_tile

    def tile_major(w):  # (rows, 3H) gate-block order -> (nt, rows, 3*tn)
        rows = w.shape[0]
        return (w.reshape(rows, 3, nt, tn)
                 .transpose(2, 0, 1, 3)
                 .reshape(nt, rows, 3 * tn))

    Wx = jnp.concatenate([params["W_xr"], params["W_xu"], params["W_xc"]], axis=1)
    Wh = jnp.concatenate([params["W_hr"], params["W_hu"], params["W_hc"]], axis=1)
    # Reproduce the module's interleaved bias: cat([(H,1)]*3, dim=1).reshape(1,3H)
    b = jnp.concatenate([params["b_r"], params["b_u"], params["b_c"]],
                        axis=1).reshape(1, 3 * H)

    return {
        "Wx": tile_major(Wx).astype(weight_dtype),
        "Wh": tile_major(Wh).astype(weight_dtype),
        "b": tile_major(b).astype(jnp.float32),   # (nt, 1, 3*tn), kept f32
        "input_size": int(D),
        "hidden_size": int(H),
        "hidden_tile": int(tn),
    }


# ---------------------------------------------------------------------------
# Forward wrapper
# ---------------------------------------------------------------------------
def gru_cell_forward(x, packed, h=None):
    """GRUCell.forward with packed parameters (see pack_gru_params)."""
    x = x.astype(jnp.float32)                 # module: x = x.float()
    B = x.shape[0]
    D = packed["input_size"]
    H = packed["hidden_size"]
    tn = packed["hidden_tile"]
    nt = H // tn
    wdt = packed["Wx"].dtype
    wbytes = jnp.dtype(wdt).itemsize

    if h is None:
        h = jnp.zeros((B, H), dtype=jnp.float32)
    h32 = h.astype(jnp.float32)

    # Cast x/h to the weight dtype ONCE here (no per-grid-step casts in kernel).
    x_w = x.astype(wdt)
    h_w = h32.astype(wdt)

    cost = pl.CostEstimate(
        flops=2 * B * (D + H) * 3 * H,
        transcendentals=3 * B * H,
        bytes_accessed=((D + H) * 3 * H * wbytes        # weight slabs
                        + 3 * H * 4                     # bias slabs
                        + B * (D + H) * wbytes          # x_w, h_w
                        + B * H * 4                     # h_f32 tiles
                        + B * H * 4),                   # output
    )

    grid_spec = pltpu.PrefetchScalarGridSpec(
        num_scalar_prefetch=0,
        grid=(nt,),
        in_specs=[
            pl.BlockSpec((B, D), lambda j: (0, 0)),             # x   resident (wdt)
            pl.BlockSpec((B, H), lambda j: (0, 0)),             # h   resident (wdt)
            pl.BlockSpec((B, tn), lambda j: (0, j)),            # h   f32 tile (blend)
            pl.BlockSpec((1, D, 3 * tn), lambda j: (j, 0, 0)),  # Wx slab (contiguous)
            pl.BlockSpec((1, H, 3 * tn), lambda j: (j, 0, 0)),  # Wh slab (contiguous)
            pl.BlockSpec((1, 1, 3 * tn), lambda j: (j, 0, 0)),  # bias slab (f32)
        ],
        out_specs=pl.BlockSpec((B, tn), lambda j: (0, j)),      # new h tile
    )

    return pl.pallas_call(
        _gru_kernel,
        out_shape=jax.ShapeDtypeStruct((B, H), jnp.float32),
        grid_spec=grid_spec,
        compiler_params=pltpu.CompilerParams(
            dimension_semantics=("parallel",),
            vmem_limit_bytes=_vmem_limit_bytes(),
        ),
        cost_estimate=cost,
    )(x_w, h_w, h32, packed["Wx"], packed["Wh"], packed["b"])


# ---------------------------------------------------------------------------
# Init + pure-JAX reference (mirror of the PyTorch forward)
# ---------------------------------------------------------------------------
def init_params(key, input_size, hidden_size):
    ks = jax.random.split(key, 9)
    s = 0.1
    return {
        "W_xr": s * jax.random.normal(ks[0], (input_size, hidden_size), jnp.float32),
        "W_hr": s * jax.random.normal(ks[1], (hidden_size, hidden_size), jnp.float32),
        "b_r":  s * jax.random.normal(ks[2], (hidden_size, 1), jnp.float32),
        "W_xu": s * jax.random.normal(ks[3], (input_size, hidden_size), jnp.float32),
        "W_hu": s * jax.random.normal(ks[4], (hidden_size, hidden_size), jnp.float32),
        "b_u":  s * jax.random.normal(ks[5], (hidden_size, 1), jnp.float32),
        "W_xc": s * jax.random.normal(ks[6], (input_size, hidden_size), jnp.float32),
        "W_hc": s * jax.random.normal(ks[7], (hidden_size, hidden_size), jnp.float32),
        "b_c":  s * jax.random.normal(ks[8], (hidden_size, 1), jnp.float32),
    }


def _reference_forward(x, params, h=None, weight_dtype=jnp.float32):
    """Pure-JAX mirror of the PyTorch forward (incl. interleaved bias quirk)."""
    x = x.astype(jnp.float32)
    B = x.shape[0]
    H = params["W_hr"].shape[0]
    if h is None:
        h = jnp.zeros((B, H), dtype=jnp.float32)
    h = h.astype(jnp.float32)
    Wx = jnp.concatenate([params["W_xr"], params["W_xu"], params["W_xc"]],
                         axis=1).astype(weight_dtype)
    Wh = jnp.concatenate([params["W_hr"], params["W_hu"], params["W_hc"]],
                         axis=1).astype(weight_dtype)
    b = jnp.concatenate([params["b_r"], params["b_u"], params["b_c"]],
                        axis=1).reshape(1, -1).astype(jnp.float32)
    xb = jnp.dot(x.astype(weight_dtype), Wx,
                 preferred_element_type=jnp.float32) + b
    hh = jnp.dot(h.astype(weight_dtype), Wh,
                 preferred_element_type=jnp.float32)
    xb_r, xb_u, xb_c = jnp.split(xb, 3, axis=1)
    h_r, h_u, h_c = jnp.split(hh, 3, axis=1)
    r = jax.nn.sigmoid(xb_r + h_r)
    u = jax.nn.sigmoid(xb_u + h_u)
    c = jnp.tanh(xb_c + r * h_c)
    return (1.0 - u) * h + u * c


# ---------------------------------------------------------------------------
if __name__ == "__main__":
    key = jax.random.PRNGKey(0)
    k_p1, k_x1, k_h1, k_p2, k_x2, k_h2 = jax.random.split(key, 6)

    # ---- Test 1: small module-default shapes, f32 weights, single block ----
    input_size, hidden_size, batch = 16, 32, 2
    params = init_params(k_p1, input_size, hidden_size)
    packed = pack_gru_params(params)                     # f32, TN = H (grid=(1,))
    x = jax.random.normal(k_x1, (batch, input_size), jnp.float32)
    h0 = jax.random.normal(k_h1, (batch, hidden_size), jnp.float32)

    out_zero_h = gru_cell_forward(x, packed, h=None)     # default zero hidden
    out = gru_cell_forward(x, packed, h=h0)
    jax.block_until_ready(out_zero_h)
    jax.block_until_ready(out)

    ref_zero = _reference_forward(x, params, h=None)
    ref = _reference_forward(x, params, h=h0)
    assert jnp.allclose(out_zero_h, ref_zero, atol=1e-5, rtol=1e-5)
    assert jnp.allclose(out, ref, atol=1e-5, rtol=1e-5)

    # ---- Test 2: bf16 weights + hidden-dim grid (exercise the tiled path) ---
    D2, H2, B2 = 64, 256, 8
    params2 = init_params(k_p2, D2, H2)
    packed2 = pack_gru_params(params2, weight_dtype=jnp.bfloat16, hidden_tile=128)
    x2 = jax.random.normal(k_x2, (B2, D2), jnp.float32)
    h2 = jax.random.normal(k_h2, (B2, H2), jnp.float32)

    out2 = gru_cell_forward(x2, packed2, h=h2)
    jax.block_until_ready(out2)

    ref2 = _reference_forward(x2, params2, h=h2, weight_dtype=jnp.bfloat16)
    assert jnp.allclose(out2, ref2, atol=2e-2, rtol=2e-2)

    print("KERNEL_OK")
</pallas_src>

<mosaic_0001>
module attributes {stable_mosaic.version = 11 : i64} {
  func.func @_gru_kernel(%arg0: i32, %arg1: memref<2x16xf32, #tpu.memory_space<vmem>>, %arg2: memref<2x32xf32, #tpu.memory_space<vmem>>, %arg3: memref<2x32xf32, #tpu.memory_space<vmem>>, %arg4: memref<1x16x96xf32, #tpu.memory_space<vmem>>, %arg5: memref<1x32x96xf32, #tpu.memory_space<vmem>>, %arg6: memref<1x1x96xf32, #tpu.memory_space<vmem>>, %arg7: memref<2x32xf32, #tpu.memory_space<vmem>>) attributes {dimension_semantics = [#tpu.dimension_semantics<parallel>], iteration_bounds = array<i64: 1>, scalar_prefetch = 0 : i64, scratch_operands = 0 : i64, tpu.core_type = #tpu.core_type<tc>, window_params = [{pipeline_mode = #tpu.pipeline_mode<synchronous>, transform_indices = @transform_0, window_bounds = array<i64: 2, 16>}, {pipeline_mode = #tpu.pipeline_mode<synchronous>, transform_indices = @transform_1, window_bounds = array<i64: 2, 32>}, {transform_indices = @transform_2, window_bounds = array<i64: 2, 32>}, {transform_indices = @transform_3, window_bounds = array<i64: 1, 16, 96>}, {transform_indices = @transform_4, window_bounds = array<i64: 1, 32, 96>}, {transform_indices = @transform_5, window_bounds = array<i64: 1, 1, 96>}, {transform_indices = @transform_6, window_bounds = array<i64: 2, 32>}]} {
    %c0 = arith.constant 0 : index
    %c0_0 = arith.constant 0 : index
    %0 = vector.load %arg1[%c0, %c0_0] : memref<2x16xf32, #tpu.memory_space<vmem>>, vector<2x16xf32>
    %c0_1 = arith.constant 0 : index
    %c0_2 = arith.constant 0 : index
    %c0_3 = arith.constant 0 : index
    %1 = vector.load %arg4[%c0_1, %c0_2, %c0_3] : memref<1x16x96xf32, #tpu.memory_space<vmem>>, vector<1x16x96xf32>
    %2 = vector.shape_cast %1 : vector<1x16x96xf32> to vector<16x96xf32>
    %cst = arith.constant dense<0.000000e+00> : vector<2x96xf32>
    %3 = tpu.matmul %0, %2, %cst {dimension_numbers = #tpu.dot_dimension_numbers<[1], [0], [0], [1], [0, 0, 1, 1], [], []>} : vector<2x16xf32>, vector<16x96xf32>, vector<2x96xf32> -> vector<2x96xf32>
    %c0_4 = arith.constant 0 : index
    %c0_5 = arith.constant 0 : index
    %c0_6 = arith.constant 0 : index
    %4 = vector.load %arg6[%c0_4, %c0_5, %c0_6] : memref<1x1x96xf32, #tpu.memory_space<vmem>>, vector<1x1x96xf32>
    %5 = vector.shape_cast %4 : vector<1x1x96xf32> to vector<1x96xf32>
    %6 = vector.broadcast %5 : vector<1x96xf32> to vector<2x96xf32>
    %7 = arith.addf %3, %6 : vector<2x96xf32>
    %c0_7 = arith.constant 0 : index
    %c0_8 = arith.constant 0 : index
    %8 = vector.load %arg2[%c0_7, %c0_8] : memref<2x32xf32, #tpu.memory_space<vmem>>, vector<2x32xf32>
    %c0_9 = arith.constant 0 : index
    %c0_10 = arith.constant 0 : index
    %c0_11 = arith.constant 0 : index
    %9 = vector.load %arg5[%c0_9, %c0_10, %c0_11] : memref<1x32x96xf32, #tpu.memory_space<vmem>>, vector<1x32x96xf32>
    %10 = vector.shape_cast %9 : vector<1x32x96xf32> to vector<32x96xf32>
    %cst_12 = arith.constant dense<0.000000e+00> : vector<2x96xf32>
    %11 = tpu.matmul %8, %10, %cst_12 {dimension_numbers = #tpu.dot_dimension_numbers<[1], [0], [0], [1], [0, 0, 1, 1], [], []>} : vector<2x32xf32>, vector<32x96xf32>, vector<2x96xf32> -> vector<2x96xf32>
    %12 = vector.extract_strided_slice %7 {offsets = [0, 0], sizes = [2, 32], strides = [1, 1]} : vector<2x96xf32> to vector<2x32xf32>
    %13 = vector.extract_strided_slice %7 {offsets = [0, 32], sizes = [2, 32], strides = [1, 1]} : vector<2x96xf32> to vector<2x32xf32>
    %14 = vector.extract_strided_slice %7 {offsets = [0, 64], sizes = [2, 32], strides = [1, 1]} : vector<2x96xf32> to vector<2x32xf32>
    %15 = vector.extract_strided_slice %11 {offsets = [0, 0], sizes = [2, 32], strides = [1, 1]} : vector<2x96xf32> to vector<2x32xf32>
    %16 = vector.extract_strided_slice %11 {offsets = [0, 32], sizes = [2, 32], strides = [1, 1]} : vector<2x96xf32> to vector<2x32xf32>
    %17 = vector.extract_strided_slice %11 {offsets = [0, 64], sizes = [2, 32], strides = [1, 1]} : vector<2x96xf32> to vector<2x32xf32>
    %18 = arith.addf %12, %15 : vector<2x32xf32>
    %19 = arith.negf %18 : vector<2x32xf32>
    %20 = math.exp %19 : vector<2x32xf32>
    %cst_13 = arith.constant 1.000000e+00 : f32
    %21 = vector.broadcast %cst_13 : f32 to vector<2x32xf32>
    %22 = arith.addf %21, %20 : vector<2x32xf32>
    %23 = arith.divf %21, %22 : vector<2x32xf32>
    %24 = arith.addf %13, %16 : vector<2x32xf32>
    %25 = arith.negf %24 : vector<2x32xf32>
    %26 = math.exp %25 : vector<2x32xf32>
    %cst_14 = arith.constant 1.000000e+00 : f32
    %27 = vector.broadcast %cst_14 : f32 to vector<2x32xf32>
    %28 = arith.addf %27, %26 : vector<2x32xf32>
    %29 = arith.divf %27, %28 : vector<2x32xf32>
    %30 = arith.mulf %23, %17 : vector<2x32xf32>
    %31 = arith.addf %14, %30 : vector<2x32xf32>
    %32 = math.tanh %31 : vector<2x32xf32>
    %cst_15 = arith.constant 1.000000e+00 : f32
    %33 = vector.broadcast %cst_15 : f32 to vector<2x32xf32>
    %34 = arith.subf %33, %29 : vector<2x32xf32>
    %c0_16 = arith.constant 0 : index
    %c0_17 = arith.constant 0 : index
    %35 = vector.load %arg3[%c0_16, %c0_17] : memref<2x32xf32, #tpu.memory_space<vmem>>, vector<2x32xf32>
    %36 = arith.mulf %34, %35 : vector<2x32xf32>
    %37 = arith.mulf %29, %32 : vector<2x32xf32>
    %38 = arith.addf %36, %37 : vector<2x32xf32>
    %c0_18 = arith.constant 0 : index
    %c0_19 = arith.constant 0 : index
    %39 = vector.load %arg7[%c0_18, %c0_19] : memref<2x32xf32, #tpu.memory_space<vmem>>, vector<2x32xf32>
    tpu.vector_store %arg7[%c0_18, %c0_19], %38 {strides = array<i32>} : memref<2x32xf32, #tpu.memory_space<vmem>>, vector<2x32xf32>,
    return
  }
  func.func @transform_0(%arg0: i32) -> (i32, i32) {
    %c0_i32 = arith.constant 0 : i32
    %c0_i32_0 = arith.constant 0 : i32
    %c0_i32_1 = arith.constant 0 : i32
    return %c0_i32, %c0_i32_0 : i32, i32
  }
  func.func @transform_1(%arg0: i32) -> (i32, i32) {
    %c0_i32 = arith.constant 0 : i32
    %c0_i32_0 = arith.constant 0 : i32
    %c0_i32_1 = arith.constant 0 : i32
    return %c0_i32, %c0_i32_0 : i32, i32
  }
  func.func @transform_2(%arg0: i32) -> (i32, i32) {
    %c0_i32 = arith.constant 0 : i32
    %c0_i32_0 = arith.constant 0 : i32
    return %c0_i32, %arg0 : i32, i32
  }
  func.func @transform_3(%arg0: i32) -> (i32, i32, i32) {
    %c0_i32 = arith.constant 0 : i32
    %c0_i32_0 = arith.constant 0 : i32
    %c0_i32_1 = arith.constant 0 : i32
    return %arg0, %c0_i32, %c0_i32_0 : i32, i32, i32
  }
  func.func @transform_4(%arg0: i32) -> (i32, i32, i32) {
    %c0_i32 = arith.constant 0 : i32
    %c0_i32_0 = arith.constant 0 : i32
    %c0_i32_1 = arith.constant 0 : i32
    return %arg0, %c0_i32, %c0_i32_0 : i32, i32, i32
  }
  func.func @transform_5(%arg0: i32) -> (i32, i32, i32) {
    %c0_i32 = arith.constant 0 : i32
    %c0_i32_0 = arith.constant 0 : i32
    %c0_i32_1 = arith.constant 0 : i32
    return %arg0, %c0_i32, %c0_i32_0 : i32, i32, i32
  }
  func.func @transform_6(%arg0: i32) -> (i32, i32) {
    %c0_i32 = arith.constant 0 : i32
    %c0_i32_0 = arith.constant 0 : i32
    return %c0_i32, %arg0 : i32, i32
  }
}

</mosaic_0001>

<llo_original>
// kernel: tpu_custom_call.1
$region0: #{tpu_custom_call.1}
  #allocation0 [shape = 'u32[]', space=smem, size = 0x4, offset = 0x4, fixed_abs, tag = 'smem constant byte address 0x4 - core index']
  #allocation1 [shape = 'u32[144,128]{1,0:T(1,128)}', space=vmem, size = 0x12000, scoped, tag = 'internal scratch']
  %s0 = inlined_call_operand.hbm [shape: f32[2,16], index: 0, kind: input, shape index: {}]
  %s1 = inlined_call_operand.hbm [shape: f32[2,32], index: 1, kind: input, shape index: {}]
  %s2 = inlined_call_operand.vmem [shape: f32[2,32], index: 2, kind: input, shape index: {}]
  %s3 = inlined_call_operand.hbm [shape: f32[1,16,96], index: 3, kind: input, shape index: {}]
  %s4 = inlined_call_operand.hbm [shape: f32[1,32,96], index: 4, kind: input, shape index: {}]
  %s5 = inlined_call_operand.vmem [shape: f32[1,1,96], index: 5, kind: input, shape index: {}]
  %s6 = inlined_call_operand.hbm [shape: f32[2,32], index: 6, kind: output, shape index: {}]
  %s7 = sld [smem:[#allocation0]]
  $region50: #{tpu_custom_call.1} parent=0
    _
  %s9 = ssub.s32 1, %s7
  %s10 = scalar_select 0, %s9, %s7
  $region1: #{tpu_custom_call.1} parent=0
    #allocation2 [shape = 'u8[1024]{0}', space=vmem, size = 0x400, scoped, tag = 'input window, operand 0, single buffered']
    #allocation3 [shape = 's32[1]{0}', space=sflag, size = 0x4, scoped, tag = 'scoped memory for tpu_custom_call.1']
    #allocation4 [shape = 's32[1]{0}', space=sflag, size = 0x4, scoped, tag = 'scoped memory for tpu_custom_call.1']
    #allocation5 [shape = 'u8[1024]{0}', space=vmem, size = 0x400, scoped, tag = 'input window, operand 1, single buffered']
    #allocation6 [shape = 's32[1]{0}', space=sflag, size = 0x4, scoped, tag = 'scoped memory for tpu_custom_call.1']
    #allocation7 [shape = 'u8[8192]{0}', space=vmem, size = 0x2000, scoped, tag = 'input window, operand 3, single buffered']
    #allocation8 [shape = 'u8[16384]{0}', space=vmem, size = 0x4000, scoped, tag = 'input window, operand 4, single buffered']
    #allocation9 [shape = 's32[1]{0}', space=sflag, size = 0x4, scoped, tag = 'scoped memory for tpu_custom_call.1']
    #allocation10 [shape = 'u8[1024]{0}', space=vmem, size = 0x400, scoped, tag = 'output window, operand 0, single buffered']
    %11 = vsyncpa [#allocation3], 0
    %12 = vsyncpa [#allocation6], 0
    %13 = vsyncpa [#allocation9], 0
    %14 = vsyncpa [#allocation4], 0
    // Predicated region
    $region2: #{tpu_custom_call.1} parent=1 // pred_check
      _
    $region3: #{tpu_custom_call.1} parent=1 // pred_check_branch
      %16 = sbr.rel (0) target = $region5
    $region4: #{tpu_custom_call.1} parent=1 // pred_region
      %s18 = ssub.s32 32, 32
      %19 = vsyncadd [#allocation3], %s18
      %s21 = sshll.u32 [#allocation2], 4
      %s22 = int_to_ptr.vmem [resolvable:$true] %s21
      %24 = dma.hbm_to_vmem [thread:$0]  %s0, 32, %s22, [#allocation3]
    $region5: #{tpu_custom_call.1} parent=1 // pred_fallthru
      _
    // Predicated region
    $region6: #{tpu_custom_call.1} parent=1 // pred_check
      _
    $region7: #{tpu_custom_call.1} parent=1 // pred_check_branch
      %26 = sbr.rel (0) target = $region9
    $region8: #{tpu_custom_call.1} parent=1 // pred_region
      %s28 = ssub.s32 32, 32
      %29 = vsyncadd [#allocation6], %s28
      %s31 = sshll.u32 [#allocation5], 4
      %s32 = int_to_ptr.vmem [resolvable:$true] %s31
      %34 = dma.hbm_to_vmem [thread:$0]  %s1, 32, %s32, [#allocation6]
    $region9: #{tpu_custom_call.1} parent=1 // pred_fallthru
      _
    // Predicated region
    $region10: #{tpu_custom_call.1} parent=1 // pred_check
      _
    $region11: #{tpu_custom_call.1} parent=1 // pred_check_branch
      %36 = sbr.rel (0) target = $region13
    $region12: #{tpu_custom_call.1} parent=1 // pred_region
      _
    $region13: #{tpu_custom_call.1} parent=1 // pred_fallthru
      _
    // Predicated region
    $region14: #{tpu_custom_call.1} parent=1 // pred_check
      _
    $region15: #{tpu_custom_call.1} parent=1 // pred_check_branch
      %38 = sbr.rel (0) target = $region17
    $region16: #{tpu_custom_call.1} parent=1 // pred_region
      %s40 = ssub.s32 256, 256
      %41 = vsyncadd [#allocation6], %s40
      %s42 = sshll.u32 [#allocation7], 4
      %s43 = int_to_ptr.vmem [resolvable:$true] %s42
      %48 = dma.hbm_to_vmem [thread:$0]  %s3, 256, %s43, [#allocation6], 128, 128, 8
    $region17: #{tpu_custom_call.1} parent=1 // pred_fallthru
      _
    // Predicated region
    $region18: #{tpu_custom_call.1} parent=1 // pred_check
      _
    $region19: #{tpu_custom_call.1} parent=1 // pred_check_branch
      %50 = sbr.rel (0) target = $region21
    $region20: #{tpu_custom_call.1} parent=1 // pred_region
      %s52 = ssub.s32 512, 512
      %53 = vsyncadd [#allocation9], %s52
      %s54 = sshll.u32 [#allocation8], 4
      %s55 = int_to_ptr.vmem [resolvable:$true] %s54
      %60 = dma.hbm_to_vmem [thread:$0]  %s4, 512, %s55, [#allocation9], 128, 128, 8
    $region21: #{tpu_custom_call.1} parent=1 // pred_fallthru
      _
    // Predicated region
    $region22: #{tpu_custom_call.1} parent=1 // pred_check
      _
    $region23: #{tpu_custom_call.1} parent=1 // pred_check_branch
      %62 = sbr.rel (0) target = $region25
    $region24: #{tpu_custom_call.1} parent=1 // pred_region
      _
    $region25: #{tpu_custom_call.1} parent=1 // pred_fallthru
      _
    // Predicated region
    $region26: #{tpu_custom_call.1} parent=1 // pred_check
      _
    $region27: #{tpu_custom_call.1} parent=1 // pred_check_branch
      %64 = sbr.rel (0) target = $region29
    $region28: #{tpu_custom_call.1} parent=1 // pred_region
      %65 = dma.done [#allocation3], 32
    $region29: #{tpu_custom_call.1} parent=1 // pred_fallthru
      _
    // Predicated region
    $region30: #{tpu_custom_call.1} parent=1 // pred_check
      _
    $region31: #{tpu_custom_call.1} parent=1 // pred_check_branch
      %67 = sbr.rel (0) target = $region33
    $region32: #{tpu_custom_call.1} parent=1 // pred_region
      %68 = dma.done [#allocation6], 32
    $region33: #{tpu_custom_call.1} parent=1 // pred_fallthru
      _
    // Predicated region
    $region34: #{tpu_custom_call.1} parent=1 // pred_check
      _
    $region35: #{tpu_custom_call.1} parent=1 // pred_check_branch
      %70 = sbr.rel (0) target = $region37
    $region36: #{tpu_custom_call.1} parent=1 // pred_region
      %71 = dma.done [#allocation6], 256
    $region37: #{tpu_custom_call.1} parent=1 // pred_fallthru
      _
    // Predicated region
    $region38: #{tpu_custom_call.1} parent=1 // pred_check
      _
    $region39: #{tpu_custom_call.1} parent=1 // pred_check_branch
      %73 = sbr.rel (0) target = $region41
    $region40: #{tpu_custom_call.1} parent=1 // pred_region
      %74 = dma.done [#allocation9], 512
    $region41: #{tpu_custom_call.1} parent=1 // pred_fallthru
      _
    %v75 = vld [vmem:[#allocation2] sm:$0x3]
    %v76 = vld [vmem:[#allocation7] sm:$0xff]
    %v77 = vld [vmem:[#allocation7 + $0x8] sm:$0xff]
    %v78 = vld [vmem:[%s5] sm:$0x1]
    %v80 = vlaneseq
    %v81 = vshrl.u32 %v80, 7
    %v82 = vsub.s32 0, %v81
    %v83 = vrot.slane %v78, %v82
    %vm85 = vcmask 130048
    %v87 = vsel %vm85, %v75, 0
    %89 = vmatprep.subr.mxu0 0.0
    %90 = vmatpush1.msra.mxu0 0.0
    %91 = vmatprep.subr.mxu0 0.0
    %92 = vmatpush1.msra.mxu0 0.0
    %93 = vmatprep.subr.mxu0 0.0
    %94 = vmatpush1.msra.mxu0 0.0
    %95 = vmatprep.subr.mxu0 0.0
    %96 = vmatpush1.msra.mxu0 0.0
    %97 = vmatprep.subr.mxu0 0.0
    %98 = vmatpush1.msra.mxu0 0.0
    %99 = vmatprep.subr.mxu0 0.0
    %100 = vmatpush1.msra.mxu0 0.0
    %101 = vmatprep.subr.mxu0 0.0
    %102 = vmatpush1.msra.mxu0 0.0
    %103 = vmatprep.subr.mxu0 0.0
    %104 = vmatpush1.msra.mxu0 0.0
    %105 = vmatprep.subr.mxu0 0.0
    %106 = vmatpush1.msra.mxu0 0.0
    %107 = vmatprep.subr.mxu0 0.0
    %108 = vmatpush1.msra.mxu0 0.0
    %109 = vmatprep.subr.mxu0 0.0
    %110 = vmatpush1.msra.mxu0 0.0
    %111 = vmatprep.subr.mxu0 0.0
    %112 = vmatpush1.msra.mxu0 0.0
    %113 = vmatprep.subr.mxu0 0.0
    %114 = vmatpush1.msra.mxu0 0.0
    %115 = vmatprep.subr.mxu0 0.0
    %116 = vmatpush1.msra.mxu0 0.0
    %117 = vmatprep.subr.mxu0 0.0
    %118 = vmatpush1.msra.mxu0 %v77
    %119 = vmatprep.subr.mxu0 0.0
    %120 = vmatpush1.msra.mxu0 %v76
    %121 = vmatprep.subr.mxu0 0.0
    %122 = vmatpush2.msra.mxu0 0.0
    %123 = vmatprep.subr.mxu0 0.0
    %124 = vmatpush2.msra.mxu0 0.0
    %125 = vmatprep.subr.mxu0 0.0
    %126 = vmatpush2.msra.mxu0 0.0
    %127 = vmatprep.subr.mxu0 0.0
    %128 = vmatpush2.msra.mxu0 0.0
    %129 = vmatprep.subr.mxu0 0.0
    %130 = vmatpush2.msra.mxu0 0.0
    %131 = vmatprep.subr.mxu0 0.0
    %132 = vmatpush2.msra.mxu0 0.0
    %133 = vmatprep.subr.mxu0 0.0
    %134 = vmatpush2.msra.mxu0 0.0
    %135 = vmatprep.subr.mxu0 0.0
    %136 = vmatpush2.msra.mxu0 0.0
    %137 = vmatprep.subr.mxu0 0.0
    %138 = vmatpush2.msra.mxu0 0.0
    %139 = vmatprep.subr.mxu0 0.0
    %140 = vmatpush2.msra.mxu0 0.0
    %141 = vmatprep.subr.mxu0 0.0
    %142 = vmatpush2.msra.mxu0 0.0
    %143 = vmatprep.subr.mxu0 0.0
    %144 = vmatpush2.msra.mxu0 0.0
    %145 = vmatprep.subr.mxu0 0.0
    %146 = vmatpush2.msra.mxu0 0.0
    %147 = vmatprep.subr.mxu0 0.0
    %148 = vmatpush2.msra.mxu0 0.0
    %149 = vmatprep.subr.mxu0 0.0
    %150 = vmatpush2.msra.mxu0 0.0
    %151 = vmatprep.subr.mxu0 0.0
    %152 = vmatpush2.msra.mxu0 0.0
    %153 = vmatprep.mubr.f32.mxu0 0.0
    %154 = vmatmul.mubr.f32.gmra.mxu0 %v87
    %v155 = vpop.f32.mrf.mxu0
    %v156 = vadd.f32 %v83, %v155
    %v157 = vpop.f32.mrf.mxu0
    %158 = vdwg.mxu0
    %v159 = vld [vmem:[#allocation5] sm:$0x3]
    %v160 = vld [vmem:[#allocation8] sm:$0xff]
    %v161 = vld [vmem:[#allocation8 + $0x8] sm:$0xff]
    %v162 = vld [vmem:[#allocation8 + $0x10] sm:$0xff]
    %v163 = vld [vmem:[#allocation8 + $0x18] sm:$0xff]
    %vm164 = vcmask 261120
    %v166 = vsel %vm164, %v159, 0
    %168 = vmatprep.subr.mxu0 0.0
    %169 = vmatpush1.msra.mxu0 0.0
    %170 = vmatprep.subr.mxu0 0.0
    %171 = vmatpush1.msra.mxu0 0.0
    %172 = vmatprep.subr.mxu0 0.0
    %173 = vmatpush1.msra.mxu0 0.0
    %174 = vmatprep.subr.mxu0 0.0
    %175 = vmatpush1.msra.mxu0 0.0
    %176 = vmatprep.subr.mxu0 0.0
    %177 = vmatpush1.msra.mxu0 0.0
    %178 = vmatprep.subr.mxu0 0.0
    %179 = vmatpush1.msra.mxu0 0.0
    %180 = vmatprep.subr.mxu0 0.0
    %181 = vmatpush1.msra.mxu0 0.0
    %182 = vmatprep.subr.mxu0 0.0
    %183 = vmatpush1.msra.mxu0 0.0
    %184 = vmatprep.subr.mxu0 0.0
    %185 = vmatpush1.msra.mxu0 0.0
    %186 = vmatprep.subr.mxu0 0.0
    %187 = vmatpush1.msra.mxu0 0.0
    %188 = vmatprep.subr.mxu0 0.0
    %189 = vmatpush1.msra.mxu0 0.0
    %190 = vmatprep.subr.mxu0 0.0
    %191 = vmatpush1.msra.mxu0 0.0
    %192 = vmatprep.subr.mxu0 0.0
    %193 = vmatpush1.msra.mxu0 %v163
    %194 = vmatprep.subr.mxu0 0.0
    %195 = vmatpush1.msra.mxu0 %v162
    %196 = vmatprep.subr.mxu0 0.0
    %197 = vmatpush1.msra.mxu0 %v161
    %198 = vmatprep.subr.mxu0 0.0
    %199 = vmatpush1.msra.mxu0 %v160
    %200 = vmatprep.subr.mxu0 0.0
    %201 = vmatpush2.msra.mxu0 0.0
    %202 = vmatprep.subr.mxu0 0.0
    %203 = vmatpush2.msra.mxu0 0.0
    %204 = vmatprep.subr.mxu0 0.0
    %205 = vmatpush2.msra.mxu0 0.0
    %206 = vmatprep.subr.mxu0 0.0
    %207 = vmatpush2.msra.mxu0 0.0
    %208 = vmatprep.subr.mxu0 0.0
    %209 = vmatpush2.msra.mxu0 0.0
    %210 = vmatprep.subr.mxu0 0.0
    %211 = vmatpush2.msra.mxu0 0.0
    %212 = vmatprep.subr.mxu0 0.0
    %213 = vmatpush2.msra.mxu0 0.0
    %214 = vmatprep.subr.mxu0 0.0
    %215 = vmatpush2.msra.mxu0 0.0
    %216 = vmatprep.subr.mxu0 0.0
    %217 = vmatpush2.msra.mxu0 0.0
    %218 = vmatprep.subr.mxu0 0.0
    %219 = vmatpush2.msra.mxu0 0.0
    %220 = vmatprep.subr.mxu0 0.0
    %221 = vmatpush2.msra.mxu0 0.0
    %222 = vmatprep.subr.mxu0 0.0
    %223 = vmatpush2.msra.mxu0 0.0
    %224 = vmatprep.subr.mxu0 0.0
    %225 = vmatpush2.msra.mxu0 0.0
    %226 = vmatprep.subr.mxu0 0.0
    %227 = vmatpush2.msra.mxu0 0.0
    %228 = vmatprep.subr.mxu0 0.0
    %229 = vmatpush2.msra.mxu0 0.0
    %230 = vmatprep.subr.mxu0 0.0
    %231 = vmatpush2.msra.mxu0 0.0
    %232 = vmatprep.mubr.f32.mxu0 0.0
    %233 = vmatmul.mubr.f32.gmra.mxu0 %v166
    %v234 = vpop.f32.mrf.mxu0
    %v235 = vadd.f32 0.0, %v234
    %v236 = vpop.f32.mrf.mxu0
    %237 = vdwg.mxu0
    %v238 = vadd.f32 %v156, %v235
    %v239 = vxor.u32 %v238, 2147483648
    %v240 = vmul.f32 %v239, 1.442695
    %v241 = vpow.pop %v240
    %v242 = vadd.f32 %v241, 1.0
    %v243 = vrcp.pop %v242
    %v244 = vmul.f32 1.0, %v243
    %246 = vrot.lane.b32.xlu0 %v235, 64
    %v247 = vpop.permute.xlu0 %246
    %v249 = vmul.f32 %v244, %v247
    %251 = vrot.lane.b32.xlu0 %v249, 64
    %v252 = vpop.permute.xlu0 %251
    %v254 = vadd.f32 %v156, %v252
    %v255 = vtanh.pop %v254
    %v256 = vsub.f32 1.0, %v244
    %v257 = vld [vmem:[%s2] sm:$0x3]
    %259 = vrot.lane.b32.xlu0 %v257, 32
    %v260 = vpop.permute.xlu0 %259
    %v262 = vmul.f32 %v256, %v260
    %264 = vrot.lane.b32.xlu0 %v255, 96
    %v265 = vpop.permute.xlu0 %264
    %v267 = vmul.f32 %v244, %v265
    %v268 = vadd.f32 %v262, %v267
    %270 = vrot.lane.b32.xlu0 %v268, 96
    %v271 = vpop.permute.xlu0 %270
    %vm273 = vcmask 254976
    %274 = vst.msk [vmem:[#allocation10] sm:$0x3] %vm273, %v271
    // Predicated region
    $region42: #{tpu_custom_call.1} parent=1 // pred_check
      _
    $region43: #{tpu_custom_call.1} parent=1 // pred_check_branch
      %276 = sbr.rel (0) target = $region45
    $region44: #{tpu_custom_call.1} parent=1 // pred_region
      %s278 = ssub.s32 32, 32
      %279 = vsyncadd [#allocation4], %s278
      %s281 = sshll.u32 [#allocation10], 4
      %s282 = int_to_ptr.vmem [resolvable:$true] %s281
      %284 = dma.vmem_to_hbm [thread:$0]  %s282, 32, %s6, [#allocation4]
    $region45: #{tpu_custom_call.1} parent=1 // pred_fallthru
      _
    // Predicated region
    $region46: #{tpu_custom_call.1} parent=1 // pred_check
      _
    $region47: #{tpu_custom_call.1} parent=1 // pred_check_branch
      %286 = sbr.rel (0) target = $region49
    $region48: #{tpu_custom_call.1} parent=1 // pred_region
      %287 = dma.done [#allocation4], 32
    $region49: #{tpu_custom_call.1} parent=1 // pred_fallthru
      _
    %288 = vsyncpa [#allocation3], 1
    %289 = vsyncpa [#allocation6], 1
    %290 = vsyncpa [#allocation9], 1
    %291 = vsyncpa [#allocation4], 1

</llo_original>
